<compile_context>
chip_gen: v7x
topology: tpu7x:2x2x1
jax: 0.10.0
libtpu: 0.0.40
codegen_flags: <defaults>
</compile_context>

<pallas_src>
import functools

import jax
import jax.numpy as jnp
from jax import lax
from jax.experimental import pallas as pl
from jax.experimental.pallas import tpu as pltpu


def _vmem_budget_bytes():
    """Per-generation VMEM budget (~75% of capacity, with headroom)."""
    cap = 64 * 1024 * 1024                      # conservative fallback (v7x per-TC)
    try:
        cap = int(pltpu.get_tpu_info().vmem_capacity_bytes)
    except Exception:
        pass
    return max(32 * 1024 * 1024, min(cap * 3 // 4, cap - (8 << 20)))


def _avg_readout_kernel(mask_ref, emb_ref, out_ref, rsum_ref, *, n_tail):
    k = pl.program_id(1)
    nk = pl.num_programs(1)

    @pl.when(k == 0)
    def _init():
        out_ref[...] = jnp.zeros_like(out_ref)
        rsum_ref[...] = jnp.zeros_like(rsum_ref)

    mask = mask_ref[...]            # [TM, TK], streamed in its original dtype
    emb = emb_ref[...]              # [TK, D]

    def accum(m, e):
        # Hot path: MXU matmul, f32 accumulation directly into the resident out block.
        out_ref[...] += jnp.dot(m, e, preferred_element_type=jnp.float32)
        # Row-sum of this mask tile, accumulated in f32 (no materialized cast).
        rsum_ref[...] += jnp.sum(m, axis=1, keepdims=True, dtype=jnp.float32)

    if n_tail == 0:
        accum(mask, emb)
    else:
        # N % TK != 0: the last k tile is partial; its out-of-bounds elements are
        # unspecified (stale VMEM), so zero them before accumulating.  This code
        # only exists when the tail exists, and only runs on the last k step.
        @pl.when(k < nk - 1)
        def _full():
            accum(mask, emb)

        @pl.when(k == nk - 1)
        def _tail():
            col = lax.broadcasted_iota(jnp.int32, mask.shape, 1)
            row = lax.broadcasted_iota(jnp.int32, emb.shape, 0)
            accum(jnp.where(col < n_tail, mask, jnp.zeros_like(mask)),
                  jnp.where(row < n_tail, emb, jnp.zeros_like(emb)))

    @pl.when(k == nk - 1)
    def _finalize():
        # out_ref currently holds vsum.  For row_sum > 0:
        #   F.normalize(vsum / row_sum, dim=1) == vsum / max(||vsum||, eps * row_sum)
        vsum = out_ref[...]                                   # [TM, D] f32
        rsum = rsum_ref[...]                                  # [TM, 1] f32
        sq = jnp.sum(vsum * vsum, axis=1, keepdims=True)
        denom = jnp.maximum(jnp.sqrt(sq), 1e-12 * rsum)
        out_ref[...] = vsum / denom                           # exact divide, once per M tile


def avg_readout(emb, mask, *, tm=None, tk=None):
    """Pallas TPU AvgReadout.forward(emb, mask): mask [M,N], emb [N,D] -> [M,D] f32."""
    M, N = mask.shape
    N2, D = emb.shape
    assert N == N2, "mask columns must equal emb rows"

    budget = _vmem_budget_bytes()
    mb = jnp.dtype(mask.dtype).itemsize
    eb = jnp.dtype(emb.dtype).itemsize

    # M tile: keep all of M resident when reasonable (M is tiny for AvgReadout),
    # so emb streams from HBM exactly once.  Partial M blocks are fine: their
    # out-of-bounds output rows are never written back.
    if tm is None:
        TM = M if M <= 1024 else 1024
    else:
        TM = min(int(tm), M)
        if TM < M:
            TM = max(8, (TM // 8) * 8)          # sublane multiple for partial blocks

    # K (node) tile: as big as the VMEM budget allows -- fewer grid steps, larger
    # DMAs.  Resident set ~ 2*(TM*TK*mb) mask + 2*(TK*D*eb) emb + 2*(TM*D*4) out.
    if tk is None:
        fixed = 2 * TM * D * 4 + 2 * TM * 4 + (2 << 20)       # out + rsum + slack
        per_tk = 2 * (TM * mb + D * eb)
        TK = max(128, min(2048, ((budget - fixed) // per_tk // 128) * 128))
    else:
        TK = int(tk)
    if TK >= N:
        TK = N                                  # single k step; no tail masking
    else:
        TK = max(128, (TK // 128) * 128)        # lane multiple for partial blocks
    n_tail = N % TK                             # 0 => no tail-masking code emitted

    grid = (pl.cdiv(M, TM), pl.cdiv(N, TK))     # reduction axis (N) last, "arbitrary"

    kernel = functools.partial(_avg_readout_kernel, n_tail=n_tail)

    return pl.pallas_call(
        kernel,
        out_shape=jax.ShapeDtypeStruct((M, D), jnp.float32),
        grid=grid,
        in_specs=[
            pl.BlockSpec((TM, TK), lambda i, k: (i, k)),      # mask tile
            pl.BlockSpec((TK, D), lambda i, k: (k, 0)),       # emb tile
        ],
        out_specs=pl.BlockSpec((TM, D), lambda i, k: (i, 0)), # resident f32 accumulator
        scratch_shapes=[pltpu.VMEM((TM, 1), jnp.float32)],    # row-sum accumulator
        compiler_params=pltpu.CompilerParams(
            dimension_semantics=("parallel", "arbitrary"),
            vmem_limit_bytes=int(budget),
        ),
    )(mask, emb)


def avg_readout_ref(emb, mask):
    vsum = mask @ emb
    rsum = jnp.sum(mask, axis=1, keepdims=True)
    ge = vsum / rsum
    norm = jnp.sqrt(jnp.sum(ge * ge, axis=1, keepdims=True))
    return ge / jnp.maximum(norm, 1e-12)


if __name__ == "__main__":
    key = jax.random.PRNGKey(0)
    k1, k2 = jax.random.split(key)

    # M summaries, N nodes, D hidden -- sized so the grid has multiple tiles along
    # both the parallel (M) and reduction (N) axes, including ragged tails.
    M, N, D = 24, 300, 32
    mask = (jax.random.uniform(k1, (M, N)) > 0.5).astype(jnp.float32)
    mask = mask.at[:, 0].set(1.0)              # guarantee no zero-sum rows
    emb = jax.random.normal(k2, (N, D), dtype=jnp.float32)

    out = avg_readout(emb, mask, tm=16, tk=128)   # grid = (2, 3), N tail = 44, M tail = 8
    out = jax.block_until_ready(out)

    ref = avg_readout_ref(emb, mask)
    assert out.shape == (M, D)
    # Tolerance allows for MXU default-precision f32 matmul passes vs XLA's matmul.
    assert jnp.allclose(out, ref, atol=1e-2, rtol=1e-2), "mismatch vs reference"

    print("KERNEL_OK")
</pallas_src>

<mosaic_0001>
module attributes {stable_mosaic.version = 11 : i64} {
  func.func @_avg_readout_kernel(%arg0: i32, %arg1: i32, %arg2: memref<16x128xf32, #tpu.memory_space<vmem>>, %arg3: memref<128x32xf32, #tpu.memory_space<vmem>>, %arg4: memref<16x32xf32, #tpu.memory_space<vmem>>, %arg5: memref<16x1xf32, #tpu.memory_space<vmem>>) attributes {dimension_semantics = [#tpu.dimension_semantics<parallel>, #tpu.dimension_semantics<arbitrary>], iteration_bounds = array<i64: 2, 3>, scalar_prefetch = 0 : i64, scratch_operands = 1 : i64, tpu.core_type = #tpu.core_type<tc>, window_params = [{transform_indices = @transform_0, window_bounds = array<i64: 16, 128>}, {transform_indices = @transform_1, window_bounds = array<i64: 128, 32>}, {transform_indices = @transform_2, window_bounds = array<i64: 16, 32>}]} {
    %c0_i32 = arith.constant 0 : i32
    %0 = arith.cmpi eq, %arg1, %c0_i32 : i32
    %1 = arith.extui %0 : i1 to i32
    %c0_i32_0 = arith.constant 0 : i32
    %2 = arith.cmpi ne, %1, %c0_i32_0 : i32
    scf.if %2 {
      %cst = arith.constant 0.000000e+00 : f32
      %14 = vector.broadcast %cst : f32 to vector<16x32xf32>
      %c0_9 = arith.constant 0 : index
      %c0_10 = arith.constant 0 : index
      %15 = vector.load %arg4[%c0_9, %c0_10] : memref<16x32xf32, #tpu.memory_space<vmem>>, vector<16x32xf32>
      tpu.vector_store %arg4[%c0_9, %c0_10], %14 {strides = array<i32>} : memref<16x32xf32, #tpu.memory_space<vmem>>, vector<16x32xf32>,
      %cst_11 = arith.constant 0.000000e+00 : f32
      %16 = vector.broadcast %cst_11 : f32 to vector<16x1xf32>
      %c0_12 = arith.constant 0 : index
      %c0_13 = arith.constant 0 : index
      %17 = vector.load %arg5[%c0_12, %c0_13] : memref<16x1xf32, #tpu.memory_space<vmem>>, vector<16x1xf32>
      tpu.vector_store %arg5[%c0_12, %c0_13], %16 {strides = array<i32>} : memref<16x1xf32, #tpu.memory_space<vmem>>, vector<16x1xf32>,
    } else {
    }
    %c0 = arith.constant 0 : index
    %c0_1 = arith.constant 0 : index
    %3 = vector.load %arg2[%c0, %c0_1] : memref<16x128xf32, #tpu.memory_space<vmem>>, vector<16x128xf32>
    %c0_2 = arith.constant 0 : index
    %c0_3 = arith.constant 0 : index
    %4 = vector.load %arg3[%c0_2, %c0_3] : memref<128x32xf32, #tpu.memory_space<vmem>>, vector<128x32xf32>
    %c2_i32 = arith.constant 2 : i32
    %5 = arith.cmpi slt, %arg1, %c2_i32 : i32
    %6 = arith.extui %5 : i1 to i32
    %c0_i32_4 = arith.constant 0 : i32
    %7 = arith.cmpi ne, %6, %c0_i32_4 : i32
    scf.if %7 {
      %c0_9 = arith.constant 0 : index
      %c0_10 = arith.constant 0 : index
      %14 = vector.load %arg4[%c0_9, %c0_10] : memref<16x32xf32, #tpu.memory_space<vmem>>, vector<16x32xf32>
      %cst = arith.constant dense<0.000000e+00> : vector<16x32xf32>
      %15 = tpu.matmul %3, %4, %cst {dimension_numbers = #tpu.dot_dimension_numbers<[1], [0], [0], [1], [0, 0, 1, 1], [], []>} : vector<16x128xf32>, vector<128x32xf32>, vector<16x32xf32> -> vector<16x32xf32>
      %16 = arith.addf %14, %15 : vector<16x32xf32>
      %c0_11 = arith.constant 0 : index
      %c0_12 = arith.constant 0 : index
      %17 = vector.load %arg4[%c0_11, %c0_12] : memref<16x32xf32, #tpu.memory_space<vmem>>, vector<16x32xf32>
      tpu.vector_store %arg4[%c0_11, %c0_12], %16 {strides = array<i32>} : memref<16x32xf32, #tpu.memory_space<vmem>>, vector<16x32xf32>,
      %c0_13 = arith.constant 0 : index
      %c0_14 = arith.constant 0 : index
      %18 = vector.load %arg5[%c0_13, %c0_14] : memref<16x1xf32, #tpu.memory_space<vmem>>, vector<16x1xf32>
      %cst_15 = arith.constant dense<0.000000e+00> : vector<16xf32>
      %19 = vector.multi_reduction <add>, %3, %cst_15 [1] : vector<16x128xf32> to vector<16xf32>
      %20 = vector.shape_cast %19 : vector<16xf32> to vector<16x1xf32>
      %21 = arith.addf %18, %20 : vector<16x1xf32>
      %c0_16 = arith.constant 0 : index
      %c0_17 = arith.constant 0 : index
      %22 = vector.load %arg5[%c0_16, %c0_17] : memref<16x1xf32, #tpu.memory_space<vmem>>, vector<16x1xf32>
      tpu.vector_store %arg5[%c0_16, %c0_17], %21 {strides = array<i32>} : memref<16x1xf32, #tpu.memory_space<vmem>>, vector<16x1xf32>,
    } else {
    }
    %c2_i32_5 = arith.constant 2 : i32
    %8 = arith.cmpi eq, %arg1, %c2_i32_5 : i32
    %9 = arith.extui %8 : i1 to i32
    %c0_i32_6 = arith.constant 0 : i32
    %10 = arith.cmpi ne, %9, %c0_i32_6 : i32
    scf.if %10 {
      %14 = tpu.iota {dimensions = array<i32: 1>} : vector<16x128xi32>
      %15 = tpu.iota {dimensions = array<i32: 0>} : vector<128x32xi32>
      %c44_i32 = arith.constant 44 : i32
      %16 = vector.broadcast %c44_i32 : i32 to vector<16x128xi32>
      %17 = arith.cmpi slt, %14, %16 : vector<16x128xi32>
      %cst = arith.constant 0.000000e+00 : f32
      %18 = vector.broadcast %cst : f32 to vector<16x128xf32>
      %19 = arith.select %17, %3, %18 : vector<16x128xi1>, vector<16x128xf32>
      %c44_i32_9 = arith.constant 44 : i32
      %20 = vector.broadcast %c44_i32_9 : i32 to vector<128x32xi32>
      %21 = arith.cmpi slt, %15, %20 : vector<128x32xi32>
      %cst_10 = arith.constant 0.000000e+00 : f32
      %22 = vector.broadcast %cst_10 : f32 to vector<128x32xf32>
      %23 = arith.select %21, %4, %22 : vector<128x32xi1>, vector<128x32xf32>
      %c0_11 = arith.constant 0 : index
      %c0_12 = arith.constant 0 : index
      %24 = vector.load %arg4[%c0_11, %c0_12] : memref<16x32xf32, #tpu.memory_space<vmem>>, vector<16x32xf32>
      %cst_13 = arith.constant dense<0.000000e+00> : vector<16x32xf32>
      %25 = tpu.matmul %19, %23, %cst_13 {dimension_numbers = #tpu.dot_dimension_numbers<[1], [0], [0], [1], [0, 0, 1, 1], [], []>} : vector<16x128xf32>, vector<128x32xf32>, vector<16x32xf32> -> vector<16x32xf32>
      %26 = arith.addf %24, %25 : vector<16x32xf32>
      %c0_14 = arith.constant 0 : index
      %c0_15 = arith.constant 0 : index
      %27 = vector.load %arg4[%c0_14, %c0_15] : memref<16x32xf32, #tpu.memory_space<vmem>>, vector<16x32xf32>
      tpu.vector_store %arg4[%c0_14, %c0_15], %26 {strides = array<i32>} : memref<16x32xf32, #tpu.memory_space<vmem>>, vector<16x32xf32>,
      %c0_16 = arith.constant 0 : index
      %c0_17 = arith.constant 0 : index
      %28 = vector.load %arg5[%c0_16, %c0_17] : memref<16x1xf32, #tpu.memory_space<vmem>>, vector<16x1xf32>
      %cst_18 = arith.constant dense<0.000000e+00> : vector<16xf32>
      %29 = vector.multi_reduction <add>, %19, %cst_18 [1] : vector<16x128xf32> to vector<16xf32>
      %30 = vector.shape_cast %29 : vector<16xf32> to vector<16x1xf32>
      %31 = arith.addf %28, %30 : vector<16x1xf32>
      %c0_19 = arith.constant 0 : index
      %c0_20 = arith.constant 0 : index
      %32 = vector.load %arg5[%c0_19, %c0_20] : memref<16x1xf32, #tpu.memory_space<vmem>>, vector<16x1xf32>
      tpu.vector_store %arg5[%c0_19, %c0_20], %31 {strides = array<i32>} : memref<16x1xf32, #tpu.memory_space<vmem>>, vector<16x1xf32>,
    } else {
    }
    %c2_i32_7 = arith.constant 2 : i32
    %11 = arith.cmpi eq, %arg1, %c2_i32_7 : i32
    %12 = arith.extui %11 : i1 to i32
    %c0_i32_8 = arith.constant 0 : i32
    %13 = arith.cmpi ne, %12, %c0_i32_8 : i32
    scf.if %13 {
      %c0_9 = arith.constant 0 : index
      %c0_10 = arith.constant 0 : index
      %14 = vector.load %arg4[%c0_9, %c0_10] : memref<16x32xf32, #tpu.memory_space<vmem>>, vector<16x32xf32>
      %c0_11 = arith.constant 0 : index
      %c0_12 = arith.constant 0 : index
      %15 = vector.load %arg5[%c0_11, %c0_12] : memref<16x1xf32, #tpu.memory_space<vmem>>, vector<16x1xf32>
      %16 = arith.mulf %14, %14 : vector<16x32xf32>
      %cst = arith.constant dense<0.000000e+00> : vector<16xf32>
      %17 = vector.multi_reduction <add>, %16, %cst [1] : vector<16x32xf32> to vector<16xf32>
      %18 = vector.shape_cast %17 : vector<16xf32> to vector<16x1xf32>
      %19 = math.sqrt %18 : vector<16x1xf32>
      %cst_13 = arith.constant 9.99999996E-13 : f32
      %20 = vector.broadcast %cst_13 : f32 to vector<16x1xf32>
      %21 = arith.mulf %20, %15 : vector<16x1xf32>
      %22 = arith.maximumf %19, %21 : vector<16x1xf32>
      %23 = vector.broadcast %22 : vector<16x1xf32> to vector<16x32xf32>
      %24 = arith.divf %14, %23 : vector<16x32xf32>
      %c0_14 = arith.constant 0 : index
      %c0_15 = arith.constant 0 : index
      %25 = vector.load %arg4[%c0_14, %c0_15] : memref<16x32xf32, #tpu.memory_space<vmem>>, vector<16x32xf32>
      tpu.vector_store %arg4[%c0_14, %c0_15], %24 {strides = array<i32>} : memref<16x32xf32, #tpu.memory_space<vmem>>, vector<16x32xf32>,
    } else {
    }
    return
  }
  func.func @transform_0(%arg0: i32, %arg1: i32) -> (i32, i32) {
    %c0_i32 = arith.constant 0 : i32
    return %arg0, %arg1 : i32, i32
  }
  func.func @transform_1(%arg0: i32, %arg1: i32) -> (i32, i32) {
    %c0_i32 = arith.constant 0 : i32
    %c0_i32_0 = arith.constant 0 : i32
    return %arg1, %c0_i32 : i32, i32
  }
  func.func @transform_2(%arg0: i32, %arg1: i32) -> (i32, i32) {
    %c0_i32 = arith.constant 0 : i32
    %c0_i32_0 = arith.constant 0 : i32
    return %arg0, %c0_i32 : i32, i32
  }
}

</mosaic_0001>

<llo_original>
// kernel: tpu_custom_call.1
$region0: #{tpu_custom_call.1}
  #allocation0 [shape = 'u32[]', space=smem, size = 0x4, offset = 0x4, fixed_abs, tag = 'smem constant byte address 0x4 - core index']
  #allocation1 [shape = 'u32[144,128]{1,0:T(1,128)}', space=vmem, size = 0x12000, scoped, tag = 'internal scratch']
  #allocation2 [shape = 'f32[16,1]{1,0:T(8,128)}', space=vmem, size = 0x2000, scoped, tag = 'scratch operand']
  %s0 = inlined_call_operand.vmem [shape: f32[24,300], index: 0, kind: input, shape index: {}]
  %s1 = inlined_call_operand.vmem [shape: f32[300,32], index: 1, kind: input, shape index: {}]
  %s2 = inlined_call_operand.hbm [shape: f32[24,32], index: 2, kind: output, shape index: {}]
  %s3 = sld [smem:[#allocation0]]
  $region105: #{tpu_custom_call.1} parent=0
    _
  %s5 = ssub.s32 1, %s3
  %s6 = scalar_select 0, %s5, %s3
  $region1: #{tpu_custom_call.1} parent=0
    #allocation3 [shape = 'u8[16384]{0}', space=vmem, size = 0x4000, scoped, tag = 'input window, operand 0']
    #allocation4 [shape = 'u8[16384]{0}', space=vmem, size = 0x4000, scoped, tag = 'output window, operand 0']
    #allocation5 [shape = 's32[2]{0}', space=sflag, size = 0x8, scoped, tag = 'scoped memory for tpu_custom_call.1']
    %7 = vsyncpa [#allocation5], 0
    %s8 = scalar_lea.sflag [#allocation5], 1
    %9 = vsyncpa %s8, 0
    loop: start=0, step=1, limit=8
    $region2: #{tpu_custom_call.1} parent=1 // loop_pre_header
      _
    $region3: #{tpu_custom_call.1} parent=1 // loop_header
      %s11 = sphi 0, %s15
      %p12 = scmp.ge.s32.totalorder %s11, 8
      %s18 = sphi 0, %s30
      %s19 = sphi 0, %s26
      %s20 = sphi 0, %s18
      %s21 = sphi 0, %s19
      %s22 = sphi 0, %s20
      %s23 = sphi 0, %s21
      %s35 = sphi 0, %s37
      %s38 = sphi 0, %s35
      %s39 = sphi 0, %s38
      %s55 = sphi 0, %s39
      %s61 = sphi 0, %s63
      %s64 = sphi 0, %s61
      %s65 = sphi 0, %s64
      %s81 = sphi 0, %s65
      %s87 = sphi 0, %s89
      %s90 = sphi 0, %s87
      %s91 = sphi 0, %s90
      %s107 = sphi 0, %s91
    $region4: #{tpu_custom_call.1} parent=1 // loop_header_branch
      %14 = sbr.rel (%p12) target = $region8
    $region5: #{tpu_custom_call.1} parent=1 // loop_body
      %s16 = ssub.s32 %s11, 1
      %s17 = ssub.s32 %s11, 2
      %s24 = sadd.s32 1, %s19
      %p25 = scmp.ge.s32.totalorder %s24, 3
      %s26 = scalar_select %p25, 0, %s24
      %s27 = sadd.s32 1, %s18
      %s28 = scalar_select %p25, %s27, %s18
      %p29 = scmp.ge.s32.totalorder %s28, 2
      %s30 = scalar_select %p29, 0, %s28
      %s31 = ssub.s32 %s18, %s30
      %s32 = ssub.s32 %s19, %s26
      %s33 = sor.u32 %s31, %s32
      %p34 = scmp.eq.s32.totalorder %s33, 0
      %s36 = sadd.s32 %s35, 1
      %s37 = scalar_select %p34, %s35, %s36
      %p40 = pneg %p34
      %p41 = scmp.eq.s32.totalorder %s11, 5
      %p42 = por %p40, %p41
      %p43 = scmp.ne.s32.totalorder %s35, %s38
      %p44 = scmp.eq.s32.totalorder %s11, 0
      %p45 = por %p43, %p44
      %p46 = scmp.ne.s32.totalorder %s35, %s38
      %p47 = scmp.eq.s32.totalorder %s16, 5
      %p48 = por %p46, %p47
      %p49 = scmp.ne.s32.totalorder %s38, %s39
      %p50 = scmp.eq.s32.totalorder %s16, 0
      %p51 = por %p49, %p50
      %p52 = scmp.ne.s32.totalorder %s38, %s39
      %p53 = scmp.eq.s32.totalorder %s17, 5
      %p54 = por %p52, %p53
      %p56 = scmp.ne.s32.totalorder %s39, %s55
      %p57 = scmp.eq.s32.totalorder %s17, 0
      %p58 = por %p56, %p57
      %s59 = ssub.s32 %s19, %s26
      %p60 = scmp.eq.s32.totalorder %s59, 0
      %s62 = sadd.s32 %s61, 1
      %s63 = scalar_select %p60, %s61, %s62
      %p66 = pneg %p60
      %p67 = scmp.eq.s32.totalorder %s11, 5
      %p68 = por %p66, %p67
      %p69 = scmp.ne.s32.totalorder %s61, %s64
      %p70 = scmp.eq.s32.totalorder %s11, 0
      %p71 = por %p69, %p70
      %p72 = scmp.ne.s32.totalorder %s61, %s64
      %p73 = scmp.eq.s32.totalorder %s16, 5
      %p74 = por %p72, %p73
      %p75 = scmp.ne.s32.totalorder %s64, %s65
      %p76 = scmp.eq.s32.totalorder %s16, 0
      %p77 = por %p75, %p76
      %p78 = scmp.ne.s32.totalorder %s64, %s65
      %p79 = scmp.eq.s32.totalorder %s17, 5
      %p80 = por %p78, %p79
      %p82 = scmp.ne.s32.totalorder %s65, %s81
      %p83 = scmp.eq.s32.totalorder %s17, 0
      %p84 = por %p82, %p83
      %s85 = ssub.s32 %s18, %s30
      %p86 = scmp.eq.s32.totalorder %s85, 0
      %s88 = sadd.s32 %s87, 1
      %s89 = scalar_select %p86, %s87, %s88
      %p92 = pneg %p86
      %p93 = scmp.eq.s32.totalorder %s11, 5
      %p94 = por %p92, %p93
      %p95 = scmp.ne.s32.totalorder %s87, %s90
      %p96 = scmp.eq.s32.totalorder %s11, 0
      %p97 = por %p95, %p96
      %p98 = scmp.ne.s32.totalorder %s87, %s90
      %p99 = scmp.eq.s32.totalorder %s16, 5
      %p100 = por %p98, %p99
      %p101 = scmp.ne.s32.totalorder %s90, %s91
      %p102 = scmp.eq.s32.totalorder %s16, 0
      %p103 = por %p101, %p102
      %p104 = scmp.ne.s32.totalorder %s90, %s91
      %p105 = scmp.eq.s32.totalorder %s17, 5
      %p106 = por %p104, %p105
      %p108 = scmp.ne.s32.totalorder %s91, %s107
      %p109 = scmp.eq.s32.totalorder %s17, 0
      %p110 = por %p108, %p109
      %p111 = scmp.le.s32.totalorder 1, %s11
      %p112 = scmp.lt.s32.totalorder %s11, 7
      %p113 = pnand %p111, %p112
      %p114 = pneg %p113
      // Predicated region
      $region9: #{tpu_custom_call.1} parent=5 // pred_check
        _
      $region10: #{tpu_custom_call.1} parent=5 // pred_check_branch
        %116 = sbr.rel (%p113) target = $region12
      $region11: #{tpu_custom_call.1} parent=5 // pred_region
        %s117 = ssub.s32 %s11, 1
      $region12: #{tpu_custom_call.1} parent=5 // pred_fallthru
        _
      %p118 = scmp.lt.s32.totalorder %s11, 6
      // Predicated region
      $region13: #{tpu_custom_call.1} parent=5 // pred_check
        %p119 = pneg %p118
      $region14: #{tpu_custom_call.1} parent=5 // pred_check_branch
        %121 = sbr.rel (%p119) target = $region16
      $region15: #{tpu_custom_call.1} parent=5 // pred_region
        // Predicated region
        $region17: #{tpu_custom_call.1} parent=15 // pred_check
          %p122 = pneg %p45
        $region18: #{tpu_custom_call.1} parent=15 // pred_check_branch
          %124 = sbr.rel (%p122) target = $region20
        $region19: #{tpu_custom_call.1} parent=15 // pred_region
          %s125 = sand.u32 %s35, 1
          %s126 = sand.u32 %s35, 1
          %s127 = smul.addr %s126, 16
          %s128 = scalar_lea.vmem [#allocation3], %s127
          %s129 = smul.u32 2, %s18
          %s130 = ssub.s32 3, %s129
          %p131 = scmp.lt.s32.totalorder %s130, 2
          %s132 = scalar_select %p131, %s130, 2
          %s133 = smul.u32 128, %s132
          %p134 = scmp.ne.s32.totalorder 0, %s133
          %s135 = smul.addr %s129, 3
          %s136 = sadd.s32 %s19, %s135
          %s137 = smul.addr %s136, 8
          %s138 = scalar_lea.vmem %s0, %s137
          // Predicated region
          $region21: #{tpu_custom_call.1} parent=19 // pred_check
            %p139 = pneg %p134
          $region22: #{tpu_custom_call.1} parent=19 // pred_check_branch
            %141 = sbr.rel (%p139) target = $region24
          $region23: #{tpu_custom_call.1} parent=19 // pred_region
            // Predicated region
            $region25: #{tpu_custom_call.1} parent=23 // pred_check
              _
            $region26: #{tpu_custom_call.1} parent=23 // pred_check_branch
              %143 = sbr.rel (0) target = $region28
            $region27: #{tpu_custom_call.1} parent=23 // pred_region
              // Predicated region
              $region47: #{tpu_custom_call.1} parent=27 // pred_check
                _
              $region48: #{tpu_custom_call.1} parent=27 // pred_check_branch
                %194 = sbr.rel (0) target = $region50
              $region49: #{tpu_custom_call.1} parent=27 // pred_region
                %s195 = sshrl.u32 %s132, 1
                // While loop
                $region51: #{tpu_custom_call.1} parent=49 // loop_pre_header
                  _
                $region52: #{tpu_custom_call.1} parent=49 // loop_header
                  %s197 = sphi 0, %s199
                  %p198 = scmp.ge.s32.totalorder %s197, %s195
                  %s202 = sphi 0, %s211
                  %s203 = sphi %s138, %s214
                  %s204 = sphi %s128, %s215
                $region53: #{tpu_custom_call.1} parent=49 // loop_header_branch
                  %201 = sbr.rel (%p198) target = $region57
                $region54: #{tpu_custom_call.1} parent=49 // loop_body
                  %v205 = vld [vmem:[%s203] sm:$0xff]
                  %206 = vst [vmem:[%s204] sm:$0xff] %v205
                  %v207 = vld [vmem:[%s203 + $0x18] sm:$0xff]
                  %208 = vst [vmem:[%s204 + $0x8] sm:$0xff] %v207
                  %s209 = sadd.s32 1, %s202
                  %p210 = scmp.ge.s32.totalorder %s209, %s195
                  %s211 = scalar_select %p210, 0, %s209
                  %s212 = smul.u32 %s211, 48
                  %s213 = smul.u32 %s211, 16
                  %s214 = scalar_lea.vmem %s138, %s212
                  %s215 = scalar_lea.vmem %s128, %s213 [#allocation3]
                $region55: #{tpu_custom_call.1} parent=49 // loop_footer
                  %s199 = sadd.s32 %s197, 1
                $region56: #{tpu_custom_call.1} parent=49 // loop_footer_branch
                  %196 = sbr.rel target = $region52
                $region57: #{tpu_custom_call.1} parent=49 // loop_exit
                  _
                %s216 = sshrl.u32 %s132, 1
                %s217 = sand.u32 %s132, 1
                %s218 = smul.u32 %s216, 2
                %s219 = smul.u32 24, %s218
                %s220 = scalar_lea.vmem %s138, %s219
                %s221 = smul.u32 8, %s218
                %s222 = scalar_lea.vmem %s128, %s221 [#allocation3]
                // While loop
                $region58: #{tpu_custom_call.1} parent=49 // loop_pre_header
                  _
                $region59: #{tpu_custom_call.1} parent=49 // loop_header
                  %s224 = sphi 0, %s226
                  %p225 = scmp.ge.s32.totalorder %s224, %s217
                  %s229 = sphi 0, %s236
                  %s230 = sphi %s220, %s239
                  %s231 = sphi %s222, %s240
                $region60: #{tpu_custom_call.1} parent=49 // loop_header_branch
                  %228 = sbr.rel (%p225) target = $region64
                $region61: #{tpu_custom_call.1} parent=49 // loop_body
                  %v232 = vld [vmem:[%s230] sm:$0xff]
                  %233 = vst [vmem:[%s231] sm:$0xff] %v232
                  %s234 = sadd.s32 1, %s229
                  %p235 = scmp.ge.s32.totalorder %s234, %s217
                  %s236 = scalar_select %p235, 0, %s234
                  %s237 = smul.u32 %s236, 24
                  %s238 = smul.u32 %s236, 8
                  %s239 = scalar_lea.vmem %s220, %s237
                  %s240 = scalar_lea.vmem %s222, %s238 [#allocation3]
                $region62: #{tpu_custom_call.1} parent=49 // loop_footer
                  %s226 = sadd.s32 %s224, 1
                $region63: #{tpu_custom_call.1} parent=49 // loop_footer_branch
                  %223 = sbr.rel target = $region59
                $region64: #{tpu_custom_call.1} parent=49 // loop_exit
                  _
              $region50: #{tpu_custom_call.1} parent=27 // pred_fallthru
                _
              // Predicated region
              $region65: #{tpu_custom_call.1} parent=27 // pred_check
                _
              $region66: #{tpu_custom_call.1} parent=27 // pred_check_branch
                %242 = sbr.rel target = $region68
              $region67: #{tpu_custom_call.1} parent=27 // pred_region
                _
              $region68: #{tpu_custom_call.1} parent=27 // pred_fallthru
                _
            $region28: #{tpu_custom_call.1} parent=23 // pred_fallthru
              _
            // Predicated region
            $region29: #{tpu_custom_call.1} parent=23 // pred_check
              _
            $region30: #{tpu_custom_call.1} parent=23 // pred_check_branch
              %145 = sbr.rel target = $region32
            $region31: #{tpu_custom_call.1} parent=23 // pred_region
              %s147 = sshrl.u32 %s132, 1
              // While loop
              $region33: #{tpu_custom_call.1} parent=31 // loop_pre_header
                _
              $region34: #{tpu_custom_call.1} parent=31 // loop_header
                %s149 = sphi 0, %s151
                %p150 = scmp.ge.s32.totalorder %s149, %s147
                %s154 = sphi 0, %s163
                %s155 = sphi %s138, %s166
                %s156 = sphi %s128, %s167
              $region35: #{tpu_custom_call.1} parent=31 // loop_header_branch
                %153 = sbr.rel (%p150) target = $region39
              $region36: #{tpu_custom_call.1} parent=31 // loop_body
                %v157 = vld [vmem:[%s155] sm:$0xff]
                %158 = vst [vmem:[%s156] sm:$0xff] %v157
                %v159 = vld [vmem:[%s155 + $0x18] sm:$0xff]
                %160 = vst [vmem:[%s156 + $0x8] sm:$0xff] %v159
                %s161 = sadd.s32 1, %s154
                %p162 = scmp.ge.s32.totalorder %s161, %s147
                %s163 = scalar_select %p162, 0, %s161
                %s164 = smul.u32 %s163, 48
                %s165 = smul.u32 %s163, 16
                %s166 = scalar_lea.vmem %s138, %s164
                %s167 = scalar_lea.vmem %s128, %s165 [#allocation3]
              $region37: #{tpu_custom_call.1} parent=31 // loop_footer
                %s151 = sadd.s32 %s149, 1
              $region38: #{tpu_custom_call.1} parent=31 // loop_footer_branch
                %148 = sbr.rel target = $region34
              $region39: #{tpu_custom_call.1} parent=31 // loop_exit
                _
              %s168 = sshrl.u32 %s132, 1
              %s169 = sand.u32 %s132, 1
              %s170 = smul.u32 %s168, 2
              %s171 = smul.u32 24, %s170
              %s172 = scalar_lea.vmem %s138, %s171
              %s173 = smul.u32 8, %s170
              %s174 = scalar_lea.vmem %s128, %s173 [#allocation3]
              // While loop
              $region40: #{tpu_custom_call.1} parent=31 // loop_pre_header
                _
              $region41: #{tpu_custom_call.1} parent=31 // loop_header
                %s176 = sphi 0, %s178
                %p177 = scmp.ge.s32.totalorder %s176, %s169
                %s181 = sphi 0, %s188
                %s182 = sphi %s172, %s191
                %s183 = sphi %s174, %s192
              $region42: #{tpu_custom_call.1} parent=31 // loop_header_branch
                %180 = sbr.rel (%p177) target = $region46
              $region43: #{tpu_custom_call.1} parent=31 // loop_body
                %v184 = vld [vmem:[%s182] sm:$0xff]
                %185 = vst [vmem:[%s183] sm:$0xff] %v184
                %s186 = sadd.s32 1, %s181
                %p187 = scmp.ge.s32.totalorder %s186, %s169
                %s188 = scalar_select %p187, 0, %s186
                %s189 = smul.u32 %s188, 24
                %s190 = smul.u32 %s188, 8
                %s191 = scalar_lea.vmem %s172, %s189
                %s192 = scalar_lea.vmem %s174, %s190 [#allocation3]
              $region44: #{tpu_custom_call.1} parent=31 // loop_footer
                %s178 = sadd.s32 %s176, 1
              $region45: #{tpu_custom_call.1} parent=31 // loop_footer_branch
                %175 = sbr.rel target = $region41
              $region46: #{tpu_custom_call.1} parent=31 // loop_exit
                _
            $region32: #{tpu_custom_call.1} parent=23 // pred_fallthru
              _
          $region24: #{tpu_custom_call.1} parent=19 // pred_fallthru
            _
          %243 = vnop
        $region20: #{tpu_custom_call.1} parent=15 // pred_fallthru
          _
        // Predicated region
        $region69: #{tpu_custom_call.1} parent=15 // pred_check
          %p244 = pneg %p71
        $region70: #{tpu_custom_call.1} parent=15 // pred_check_branch
          %246 = sbr.rel (%p244) target = $region72
        $region71: #{tpu_custom_call.1} parent=15 // pred_region
          %s247 = smul.u32 16, %s19
          %s248 = ssub.s32 38, %s247
          %p249 = scmp.lt.s32.totalorder %s248, 16
          %s250 = scalar_select %p249, %s248, 16
          %s251 = smul.u32 128, %s250
          %p252 = scmp.lt.s32.totalorder %s247, 37
          %s253 = scalar_select %p252, %s247, 37
          %s254 = smul.addr %s253, 8
          %s255 = scalar_lea.vmem %s1, %s254
          %s256 = smul.u32 16, %s19
          %s257 = ssub.s32 38, %s256
          %p258 = scmp.lt.s32.totalorder %s257, 16
          %s259 = scalar_select %p258, %s257, 16
          %s260 = smul.u32 128, %s259
        $region72: #{tpu_custom_call.1} parent=15 // pred_fallthru
          _
      $region16: #{tpu_custom_call.1} parent=5 // pred_fallthru
        _
      %p261 = scmp.le.s32.totalorder 1, %s11
      %p262 = scmp.lt.s32.totalorder %s11, 7
      %p263 = pnand %p261, %p262
      %p264 = pneg %p263
      // Predicated region
      $region73: #{tpu_custom_call.1} parent=5 // pred_check
        _
      $region74: #{tpu_custom_call.1} parent=5 // pred_check_branch
        %266 = sbr.rel (%p263) target = $region76
      $region75: #{tpu_custom_call.1} parent=5 // pred_region
        %s267 = ssub.s32 %s11, 1
        %s268 = sand.u32 %s38, 1
        %s269 = sand.u32 %s38, 1
        %s270 = smul.addr %s269, 16
        %s271 = scalar_lea.vmem [#allocation3], %s270
        // Predicated region
        $region77: #{tpu_custom_call.1} parent=75 // pred_check
          %p272 = pneg %p51
        $region78: #{tpu_custom_call.1} parent=75 // pred_check_branch
          %274 = sbr.rel (%p272) target = $region80
        $region79: #{tpu_custom_call.1} parent=75 // pred_region
          _
        $region80: #{tpu_custom_call.1} parent=75 // pred_fallthru
          _
        %s275 = sand.u32 %s38, 1
        %s276 = sand.u32 %s38, 1
        %s277 = smul.addr %s276, 16
        %s278 = scalar_lea.vmem [#allocation3], %s277
        %p279 = pneg %p51
        %p280 = pneg %p48
        %s281 = smul.u32 16, %s21
        %s282 = ssub.s32 38, %s281
        %p283 = scmp.lt.s32.totalorder %s282, 16
        %s284 = scalar_select %p283, %s282, 16
        %s285 = smul.u32 128, %s284
        %p286 = scmp.lt.s32.totalorder %s281, 37
        %s287 = scalar_select %p286, %s281, 37
        %s288 = smul.addr %s287, 8
        %s289 = scalar_lea.vmem %s1, %s288
        %p290 = pneg %p77
        %p291 = pneg %p74
        %p292 = pneg %p103
        %p293 = pneg %p100
        %s294 = sand.u32 %s90, 1
        %s295 = scalar_lea.sflag [#allocation5], %s294
        %s296 = sand.u32 %s90, 1
        %s297 = smul.addr %s296, 16
        %s298 = scalar_lea.vmem [#allocation4], %s297
        %s299 = smul.u32 2, %s20
        %s300 = ssub.s32 3, %s299
        %p301 = scmp.lt.s32.totalorder %s300, 2
        %s302 = scalar_select %p301, %s300, 2
        %s303 = smul.u32 128, %s302
        %s304 = smul.u32 16, %s21
        %s305 = ssub.s32 38, %s304
        %p306 = scmp.lt.s32.totalorder %s305, 16
        %s307 = scalar_select %p306, %s305, 16
        %s308 = smul.u32 128, %s307
        %p309 = scmp.lt.s32.totalorder %s304, 37
        %s310 = scalar_select %p309, %s304, 37
        %s311 = smul.addr %s310, 8
        %s312 = scalar_lea.vmem %s1, %s311
        %s313 = smul.u32 16, %s21
        %s314 = ssub.s32 38, %s313
        %p315 = scmp.lt.s32.totalorder %s314, 16
        %s316 = scalar_select %p315, %s314, 16
        %s317 = smul.u32 128, %s316
        %s318 = smul.u32 2, %s20
        %s319 = ssub.s32 3, %s318
        %p320 = scmp.lt.s32.totalorder %s319, 2
        %s321 = scalar_select %p320, %s319, 2
        %s322 = smul.u32 128, %s321
        %p323 = scmp.eq.s32.totalorder %s21, 0
        // Predicated region
        $region81: #{tpu_custom_call.1} parent=75 // pred_check
          %p324 = pneg %p323
        $region82: #{tpu_custom_call.1} parent=75 // pred_check_branch
          %326 = sbr.rel (%p324) target = $region84
        $region83: #{tpu_custom_call.1} parent=75 // pred_region
          %vm327 = vcmask 261120
          %328 = vst.msk [vmem:[%s298] sm:$0xff] %vm327, 0.0
          %329 = vst.msk [vmem:[%s298 + $0x8] sm:$0xff] %vm327, 0.0
          %vm330 = vcmask 7168
          %331 = vst.msk [vmem:[#allocation2] sm:$0xff] %vm330, 0.0
          %332 = vst.msk [vmem:[#allocation2 + $0x8] sm:$0xff] %vm330, 0.0
        $region84: #{tpu_custom_call.1} parent=75 // pred_fallthru
          _
        %v333 = vld [vmem:[%s271] sm:$0xff]
        %v334 = vld [vmem:[%s271 + $0x8] sm:$0xff]
        %v335 = vld [vmem:[%s312] sm:$0xff]
        %v336 = vld [vmem:[%s312 + $0x8] sm:$0xff]
        %v337 = vld [vmem:[%s312 + $0x10] sm:$0xff]
        %v338 = vld [vmem:[%s312 + $0x18] sm:$0xff]
        %v339 = vld [vmem:[%s312 + $0x20] sm:$0xff]
        %v340 = vld [vmem:[%s312 + $0x28] sm:$0xff]
        %v341 = vld [vmem:[%s312 + $0x30] sm:$0xff]
        %v342 = vld [vmem:[%s312 + $0x38] sm:$0xff]
        %v343 = vld [vmem:[%s312 + $0x40] sm:$0xff]
        %v344 = vld [vmem:[%s312 + $0x48] sm:$0xff]
        %v345 = vld [vmem:[%s312 + $0x50] sm:$0xff]
        %v346 = vld [vmem:[%s312 + $0x58] sm:$0xff]
        %v347 = vld [vmem:[%s312 + $0x60] sm:$0xff]
        %v348 = vld [vmem:[%s312 + $0x68] sm:$0xff]
        %v349 = vld [vmem:[%s312 + $0x70] sm:$0xff]
        %v350 = vld [vmem:[%s312 + $0x78] sm:$0xff]
        %p351 = scmp.lt.s32.totalorder %s21, 2
        // Predicated region
        $region85: #{tpu_custom_call.1} parent=75 // pred_check
          %p352 = pneg %p351
        $region86: #{tpu_custom_call.1} parent=75 // pred_check_branch
          %354 = sbr.rel (%p352) target = $region88
        $region87: #{tpu_custom_call.1} parent=75 // pred_region
          %v355 = vld [vmem:[%s298] sm:$0xff]
          %v356 = vld [vmem:[%s298 + $0x8] sm:$0xff]
          %357 = vmatprep.subr.mxu0 0.0
          %358 = vmatpush1.msra.mxu0 %v335
          %359 = vmatprep.subr.mxu0 0.0
          %360 = vmatpush1.msra.mxu0 %v336
          %361 = vmatprep.subr.mxu0 0.0
          %362 = vmatpush1.msra.mxu0 %v337
          %363 = vmatprep.subr.mxu0 0.0
          %364 = vmatpush1.msra.mxu0 %v338
          %365 = vmatprep.subr.mxu0 0.0
          %366 = vmatpush1.msra.mxu0 %v339
          %367 = vmatprep.subr.mxu0 0.0
          %368 = vmatpush1.msra.mxu0 %v340
          %369 = vmatprep.subr.mxu0 0.0
          %370 = vmatpush1.msra.mxu0 %v341
          %371 = vmatprep.subr.mxu0 0.0
          %372 = vmatpush1.msra.mxu0 %v342
          %373 = vmatprep.subr.mxu0 0.0
          %374 = vmatpush1.msra.mxu0 %v343
          %375 = vmatprep.subr.mxu0 0.0
          %376 = vmatpush1.msra.mxu0 %v344
          %377 = vmatprep.subr.mxu0 0.0
          %378 = vmatpush1.msra.mxu0 %v345
          %379 = vmatprep.subr.mxu0 0.0
          %380 = vmatpush1.msra.mxu0 %v346
          %381 = vmatprep.subr.mxu0 0.0
          %382 = vmatpush1.msra.mxu0 %v347
          %383 = vmatprep.subr.mxu0 0.0
          %384 = vmatpush1.msra.mxu0 %v348
          %385 = vmatprep.subr.mxu0 0.0
          %386 = vmatpush1.msra.mxu0 %v349
          %387 = vmatprep.subr.mxu0 0.0
          %388 = vmatpush1.msra.mxu0 %v350
          %389 = vmatprep.subr.mxu0 0.0
          %390 = vmatpush1.msra.mxu0 0.0
          %391 = vmatprep.subr.mxu0 0.0
          %392 = vmatpush1.msra.mxu0 0.0
          %393 = vmatprep.subr.mxu0 0.0
          %394 = vmatpush1.msra.mxu0 0.0
          %395 = vmatprep.subr.mxu0 0.0
          %396 = vmatpush1.msra.mxu0 0.0
          %397 = vmatprep.subr.mxu0 0.0
          %398 = vmatpush1.msra.mxu0 0.0
          %399 = vmatprep.subr.mxu0 0.0
          %400 = vmatpush1.msra.mxu0 0.0
          %401 = vmatprep.subr.mxu0 0.0
          %402 = vmatpush1.msra.mxu0 0.0
          %403 = vmatprep.subr.mxu0 0.0
          %404 = vmatpush1.msra.mxu0 0.0
          %405 = vmatprep.subr.mxu0 0.0
          %406 = vmatpush1.msra.mxu0 0.0
          %407 = vmatprep.subr.mxu0 0.0
          %408 = vmatpush1.msra.mxu0 0.0
          %409 = vmatprep.subr.mxu0 0.0
          %410 = vmatpush1.msra.mxu0 0.0
          %411 = vmatprep.subr.mxu0 0.0
          %412 = vmatpush1.msra.mxu0 0.0
          %413 = vmatprep.subr.mxu0 0.0
          %414 = vmatpush1.msra.mxu0 0.0
          %415 = vmatprep.subr.mxu0 0.0
          %416 = vmatpush1.msra.mxu0 0.0
          %417 = vmatprep.subr.mxu0 0.0
          %418 = vmatpush1.msra.mxu0 0.0
          %419 = vmatprep.subr.mxu0 0.0
          %420 = vmatpush1.msra.mxu0 0.0
          %421 = vmatprep.mubr.f32.mxu0 0.0
          %422 = vmatmul.mubr.f32.gmra.mrb[0].mxu0 %v333
          %v423 = vpop.f32.mrb[0].mxu0
          %v424 = vadd.f32 0.0, %v423
          %v425 = vpop.f32.mrb[0].mxu0
          %426 = vmatprep.mubr.f32.mxu0 0.0
          %427 = vmatmul.mubr.f32.gmra.mrb[0].mxu0 %v334
          %v428 = vpop.f32.mrb[0].mxu0
          %v429 = vadd.f32 0.0, %v428
          %v430 = vpop.f32.mrb[0].mxu0
          %431 = vdwg.mxu0
          %v432 = vadd.f32 %v355, %v424
          %v433 = vadd.f32 %v356, %v429
          %vm434 = vcmask 261120
          %435 = vst.msk [vmem:[%s298] sm:$0xff] %vm434, %v432
          %436 = vst.msk [vmem:[%s298 + $0x8] sm:$0xff] %vm434, %v433
          %v437 = vld [vmem:[#allocation2] sm:$0xff]
          %v438 = vld [vmem:[#allocation2 + $0x8] sm:$0xff]
          %439 = vadd.xlane.f32.xlu0 %v333
          %v440 = vpop.xlane.xlu0 %439
          %441 = vadd.xlane.f32.xlu0 %v334
          %v442 = vpop.xlane.xlu0 %441
          %v443 = vadd.f32 %v437, %v440
          %v444 = vadd.f32 %v438, %v442
          %vm445 = vcmask 7168
          %446 = vst.msk [vmem:[#allocation2] sm:$0xff] %vm445, %v443
          %447 = vst.msk [vmem:[#allocation2 + $0x8] sm:$0xff] %vm445, %v444
        $region88: #{tpu_custom_call.1} parent=75 // pred_fallthru
          _
        %p448 = scmp.eq.s32.totalorder %s21, 2
        // Predicated region
        $region89: #{tpu_custom_call.1} parent=75 // pred_check
          %p449 = pneg %p448
        $region90: #{tpu_custom_call.1} parent=75 // pred_check_branch
          %451 = sbr.rel (%p449) target = $region92
        $region91: #{tpu_custom_call.1} parent=75 // pred_region
          %v452 = vlaneseq
          %v453 = vand.u32 %v452, 127
          %v454 = vlaneseq
          %v455 = vshrl.u32 %v454, 7
          %v456 = vadd.s32 %v455, 8
          %v457 = vadd.s32 %v455, 16
          %v458 = vadd.s32 %v455, 24
          %v459 = vadd.s32 %v455, 32
          %v460 = vadd.s32 %v455, 40
          %v461 = vadd.s32 %v455, 48
          %v462 = vadd.s32 %v455, 56
          %v463 = vadd.s32 %v455, 64
          %v464 = vadd.s32 %v455, 72
          %v465 = vadd.s32 %v455, 80
          %v466 = vadd.s32 %v455, 88
          %v467 = vadd.s32 %v455, 96
          %v468 = vadd.s32 %v455, 104
          %v469 = vadd.s32 %v455, 112
          %v470 = vadd.s32 %v455, 120
          %vm471 = vcmp.lt.s32.totalorder %v453, 44
          %v472 = vsel %vm471, %v333, 0.0
          %v473 = vsel %vm471, %v334, 0.0
          %vm474 = vcmp.lt.s32.totalorder %v455, 44
          %vm475 = vcmp.lt.s32.totalorder %v456, 44
          %vm476 = vcmp.lt.s32.totalorder %v457, 44
          %vm477 = vcmp.lt.s32.totalorder %v458, 44
          %vm478 = vcmp.lt.s32.totalorder %v459, 44
          %vm479 = vcmp.lt.s32.totalorder %v460, 44
          %vm480 = vcmp.lt.s32.totalorder %v461, 44
          %vm481 = vcmp.lt.s32.totalorder %v462, 44
          %vm482 = vcmp.lt.s32.totalorder %v463, 44
          %vm483 = vcmp.lt.s32.totalorder %v464, 44
          %vm484 = vcmp.lt.s32.totalorder %v465, 44
          %vm485 = vcmp.lt.s32.totalorder %v466, 44
          %vm486 = vcmp.lt.s32.totalorder %v467, 44
          %vm487 = vcmp.lt.s32.totalorder %v468, 44
          %vm488 = vcmp.lt.s32.totalorder %v469, 44
          %vm489 = vcmp.lt.s32.totalorder %v470, 44
          %v490 = vsel %vm474, %v335, 0.0
          %v491 = vsel %vm475, %v336, 0.0
          %v492 = vsel %vm476, %v337, 0.0
          %v493 = vsel %vm477, %v338, 0.0
          %v494 = vsel %vm478, %v339, 0.0
          %v495 = vsel %vm479, %v340, 0.0
          %v496 = vsel %vm480, %v341, 0.0
          %v497 = vsel %vm481, %v342, 0.0
          %v498 = vsel %vm482, %v343, 0.0
          %v499 = vsel %vm483, %v344, 0.0
          %v500 = vsel %vm484, %v345, 0.0
          %v501 = vsel %vm485, %v346, 0.0
          %v502 = vsel %vm486, %v347, 0.0
          %v503 = vsel %vm487, %v348, 0.0
          %v504 = vsel %vm488, %v349, 0.0
          %v505 = vsel %vm489, %v350, 0.0
          %v506 = vld [vmem:[%s298] sm:$0xff]
          %v507 = vld [vmem:[%s298 + $0x8] sm:$0xff]
          %508 = vmatprep.subr.mxu0 0.0
          %509 = vmatpush1.msra.mxu0 %v490
          %510 = vmatprep.subr.mxu0 0.0
          %511 = vmatpush1.msra.mxu0 %v491
          %512 = vmatprep.subr.mxu0 0.0
          %513 = vmatpush1.msra.mxu0 %v492
          %514 = vmatprep.subr.mxu0 0.0
          %515 = vmatpush1.msra.mxu0 %v493
          %516 = vmatprep.subr.mxu0 0.0
          %517 = vmatpush1.msra.mxu0 %v494
          %518 = vmatprep.subr.mxu0 0.0
          %519 = vmatpush1.msra.mxu0 %v495
          %520 = vmatprep.subr.mxu0 0.0
          %521 = vmatpush1.msra.mxu0 %v496
          %522 = vmatprep.subr.mxu0 0.0
          %523 = vmatpush1.msra.mxu0 %v497
          %524 = vmatprep.subr.mxu0 0.0
          %525 = vmatpush1.msra.mxu0 %v498
          %526 = vmatprep.subr.mxu0 0.0
          %527 = vmatpush1.msra.mxu0 %v499
          %528 = vmatprep.subr.mxu0 0.0
          %529 = vmatpush1.msra.mxu0 %v500
          %530 = vmatprep.subr.mxu0 0.0
          %531 = vmatpush1.msra.mxu0 %v501
          %532 = vmatprep.subr.mxu0 0.0
          %533 = vmatpush1.msra.mxu0 %v502
          %534 = vmatprep.subr.mxu0 0.0
          %535 = vmatpush1.msra.mxu0 %v503
          %536 = vmatprep.subr.mxu0 0.0
          %537 = vmatpush1.msra.mxu0 %v504
          %538 = vmatprep.subr.mxu0 0.0
          %539 = vmatpush1.msra.mxu0 %v505
          %540 = vmatprep.subr.mxu0 0.0
          %541 = vmatpush1.msra.mxu0 0.0
          %542 = vmatprep.subr.mxu0 0.0
          %543 = vmatpush1.msra.mxu0 0.0
          %544 = vmatprep.subr.mxu0 0.0
          %545 = vmatpush1.msra.mxu0 0.0
          %546 = vmatprep.subr.mxu0 0.0
          %547 = vmatpush1.msra.mxu0 0.0
          %548 = vmatprep.subr.mxu0 0.0
          %549 = vmatpush1.msra.mxu0 0.0
          %550 = vmatprep.subr.mxu0 0.0
          %551 = vmatpush1.msra.mxu0 0.0
          %552 = vmatprep.subr.mxu0 0.0
          %553 = vmatpush1.msra.mxu0 0.0
          %554 = vmatprep.subr.mxu0 0.0
          %555 = vmatpush1.msra.mxu0 0.0
          %556 = vmatprep.subr.mxu0 0.0
          %557 = vmatpush1.msra.mxu0 0.0
          %558 = vmatprep.subr.mxu0 0.0
          %559 = vmatpush1.msra.mxu0 0.0
          %560 = vmatprep.subr.mxu0 0.0
          %561 = vmatpush1.msra.mxu0 0.0
          %562 = vmatprep.subr.mxu0 0.0
          %563 = vmatpush1.msra.mxu0 0.0
          %564 = vmatprep.subr.mxu0 0.0
          %565 = vmatpush1.msra.mxu0 0.0
          %566 = vmatprep.subr.mxu0 0.0
          %567 = vmatpush1.msra.mxu0 0.0
          %568 = vmatprep.subr.mxu0 0.0
          %569 = vmatpush1.msra.mxu0 0.0
          %570 = vmatprep.subr.mxu0 0.0
          %571 = vmatpush1.msra.mxu0 0.0
          %572 = vmatprep.mubr.f32.mxu0 0.0
          %573 = vmatmul.mubr.f32.gmra.mrb[0].mxu0 %v472
          %v574 = vpop.f32.mrb[0].mxu0
          %v575 = vadd.f32 0.0, %v574
          %v576 = vpop.f32.mrb[0].mxu0
          %577 = vmatprep.mubr.f32.mxu0 0.0
          %578 = vmatmul.mubr.f32.gmra.mrb[0].mxu0 %v473
          %v579 = vpop.f32.mrb[0].mxu0
          %v580 = vadd.f32 0.0, %v579
          %v581 = vpop.f32.mrb[0].mxu0
          %582 = vdwg.mxu0
          %v583 = vadd.f32 %v506, %v575
          %v584 = vadd.f32 %v507, %v580
          %vm585 = vcmask 261120
          %586 = vst.msk [vmem:[%s298] sm:$0xff] %vm585, %v583
          %587 = vst.msk [vmem:[%s298 + $0x8] sm:$0xff] %vm585, %v584
          %v588 = vld [vmem:[#allocation2] sm:$0xff]
          %v589 = vld [vmem:[#allocation2 + $0x8] sm:$0xff]
          %590 = vadd.xlane.f32.xlu0 %v472
          %v591 = vpop.xlane.xlu0 %590
          %592 = vadd.xlane.f32.xlu0 %v473
          %v593 = vpop.xlane.xlu0 %592
          %v594 = vadd.f32 %v588, %v591
          %v595 = vadd.f32 %v589, %v593
          %vm596 = vcmask 7168
          %597 = vst.msk [vmem:[#allocation2] sm:$0xff] %vm596, %v594
          %598 = vst.msk [vmem:[#allocation2 + $0x8] sm:$0xff] %vm596, %v595
          %v599 = vld [vmem:[%s298] sm:$0xff]
          %v600 = vld [vmem:[%s298 + $0x8] sm:$0xff]
          %v601 = vld [vmem:[#allocation2] sm:$0xff]
          %v602 = vld [vmem:[#allocation2 + $0x8] sm:$0xff]
          %v603 = vmul.f32 %v599, %v599
          %v604 = vmul.f32 %v600, %v600
          %v605 = vsel %vm585, %v603, 0.0
          %606 = vadd.xlane.f32.xlu0 %v605
          %v607 = vpop.xlane.xlu0 %606
          %v608 = vsel %vm585, %v604, 0.0
          %609 = vadd.xlane.f32.xlu0 %v608
          %v610 = vpop.xlane.xlu0 %609
          %v611 = vrsqrt.pop %v607
          %v612 = vmul.f32 %v607, %v611
          %vm613 = vcmp.eq.f32.partialorder %v607, inf
          %v614 = vsel %vm613, %v607, %v612
          %vm615 = vcmp.eq.f32.partialorder %v607, 0.0
          %v616 = vand.u32 %v607, 2147483648
          %v617 = vsel %vm615, %v616, %v614
          %v618 = vrsqrt.pop %v610
          %v619 = vmul.f32 %v610, %v618
          %vm620 = vcmp.eq.f32.partialorder %v610, inf
          %v621 = vsel %vm620, %v610, %v619
          %vm622 = vcmp.eq.f32.partialorder %v610, 0.0
          %v623 = vand.u32 %v610, 2147483648
          %v624 = vsel %vm622, %v623, %v621
          %v625 = vmul.f32 %v601, 1e-12
          %v626 = vmul.f32 %v602, 1e-12
          %v627 = vmax.f32 %v617, %v625
          %v628 = vmax.f32 %v624, %v626
          %630 = vset.pattern.permute.xlu0 0
          %631 = vperm.xlu0 %630, %v627
          %v632 = vpop.permute.xlu0 %631
          %635 = vset.pattern.permute.xlu0 0
          %636 = vperm.xlu0 %635, %v628
          %v637 = vpop.permute.xlu0 %636
          %v639 = vrcp.pop %v632
          %v640 = vmul.f32 %v599, %v639
          %v641 = vrcp.pop %v637
          %v642 = vmul.f32 %v600, %v641
          %643 = vst.msk [vmem:[%s298] sm:$0xff] %vm585, %v640
          %644 = vst.msk [vmem:[%s298 + $0x8] sm:$0xff] %vm585, %v642
        $region92: #{tpu_custom_call.1} parent=75 // pred_fallthru
          _
        %s645 = sand.u32 %s90, 1
        %s646 = scalar_lea.sflag [#allocation5], %s645
        %s647 = sand.u32 %s90, 1
        %s648 = smul.addr %s647, 16
        %s649 = scalar_lea.vmem [#allocation4], %s648
        // Predicated region
        $region93: #{tpu_custom_call.1} parent=75 // pred_check
          %p650 = pneg %p100
        $region94: #{tpu_custom_call.1} parent=75 // pred_check_branch
          %652 = sbr.rel (%p650) target = $region96
        $region95: #{tpu_custom_call.1} parent=75 // pred_region
          %s653 = smul.u32 2, %s20
          %s654 = ssub.s32 3, %s653
          %p655 = scmp.lt.s32.totalorder %s654, 2
          %s656 = scalar_select %p655, %s654, 2
          %s657 = smul.u32 128, %s656
          %s659 = ssub.s32 256, %s657
          %660 = vsyncadd %s646, %s659
          %p661 = scmp.ne.s32.totalorder 0, %s657
          %s662 = smul.addr %s653, 128
          %s663 = scalar_lea.hbm %s2, %s662
          %s664 = smul.u32 8, %s656
          %s665 = sshll.u32 %s649, 4
          %s666 = int_to_ptr.vmem [resolvable:$true] %s665
          %s667 = sshll.u32 %s664, 4
          %671 = dma.vmem_to_hbm [thread:$0]  (%p661), %s666, %s667, %s663, %s646, 128, 128, 8
        $region96: #{tpu_custom_call.1} parent=75 // pred_fallthru
          _
      $region76: #{tpu_custom_call.1} parent=5 // pred_fallthru
        _
      %p672 = scmp.le.s32.totalorder 2, %s11
      // Predicated region
      $region97: #{tpu_custom_call.1} parent=5 // pred_check
        %p673 = pneg %p672
      $region98: #{tpu_custom_call.1} parent=5 // pred_check_branch
        %675 = sbr.rel (%p673) target = $region100
      $region99: #{tpu_custom_call.1} parent=5 // pred_region
        %s676 = ssub.s32 %s11, 2
        // Predicated region
        $region101: #{tpu_custom_call.1} parent=99 // pred_check
          %p677 = pneg %p106
        $region102: #{tpu_custom_call.1} parent=99 // pred_check_branch
          %679 = sbr.rel (%p677) target = $region104
        $region103: #{tpu_custom_call.1} parent=99 // pred_region
          %s680 = sand.u32 %s91, 1
          %s681 = scalar_lea.sflag [#allocation5], %s680
          %s682 = sand.u32 %s91, 1
          %s683 = smul.addr %s682, 16
          %s684 = scalar_lea.vmem [#allocation4], %s683
          %685 = dma.done %s681, 256
        $region104: #{tpu_custom_call.1} parent=99 // pred_fallthru
          _
      $region100: #{tpu_custom_call.1} parent=5 // pred_fallthru
        _
    $region6: #{tpu_custom_call.1} parent=1 // loop_footer
      %s15 = sadd.s32 1, %s11
    $region7: #{tpu_custom_call.1} parent=1 // loop_footer_branch
      %10 = sbr.rel target = $region3
    $region8: #{tpu_custom_call.1} parent=1 // loop_exit
      _
    %686 = vsyncpa [#allocation5], 1
    %s687 = scalar_lea.sflag [#allocation5], 1
    %688 = vsyncpa %s687, 1

</llo_original>
